<compile_context>
chip_gen: v5e
topology: v5e:2x2
jax: 0.10.0
libtpu: 0.0.40
codegen_flags: <defaults>
</compile_context>

<pallas_src>
import functools

import jax
import jax.numpy as jnp
from jax.experimental import pallas as pl
from jax.experimental.pallas import tpu as pltpu

_LANE = 128      # TPU vreg lane width
_SUBLANE = 8     # TPU vreg sublane count


def _round_up(x, m):
    return ((x + m - 1) // m) * m


def _ph_kernel(x_ref, w_ref, b_ref, o_ref, *, num_actions):
    # Linear: logits = x @ W + b  (f32 accumulation on the MXU).
    # Padded weight columns are zero and padded bias lanes are -inf, so padded
    # logits are exactly -inf and contribute exp(-inf)=0 to the normalizer.
    logits = (
        jnp.dot(x_ref[...], w_ref[...], preferred_element_type=jnp.float32)
        + b_ref[...]
    )
    # Numerically stable LogSoftmax over the action (lane) axis.
    m = jnp.max(logits, axis=1, keepdims=True)
    shifted = logits - m
    lse = jnp.log(jnp.sum(jnp.exp(shifted), axis=1, keepdims=True))
    # Store only the real actions: un-padded (TB, A) output block.
    o_ref[...] = (shifted - lse)[:, :num_actions].astype(o_ref.dtype)


def ph_reference(hiddens, weight, bias):
    logits = hiddens @ weight + bias[None, :]
    return jax.nn.log_softmax(logits, axis=1)


@functools.partial(jax.jit, static_argnames=("block_b", "min_pallas_batch"))
def ph_forward(hiddens, weight, bias, *, block_b=2048, min_pallas_batch=4096):
    """PH forward.

    hiddens: (B, H)  f32 or bf16
    weight:  (H, A)  (transpose of PyTorch's (A, H) Linear weight)
    bias:    (A,)
    returns: (B, A) log-probabilities over actions (dim=1), dtype of hiddens.
    """
    B, H = hiddens.shape
    H2, A = weight.shape
    assert H == H2, (H, H2)

    # Small batch: launch overhead dominates -> let XLA fuse matmul+logsoftmax.
    if B < min_pallas_batch:
        return ph_reference(hiddens, weight, bias)

    # --- Lane-dense action dimension for the compute --------------------
    A_pad = _round_up(max(A, _LANE), _LANE)
    if A_pad != A:
        weight_p = jnp.pad(weight, ((0, 0), (0, A_pad - A)))
        bias_p = jnp.concatenate(
            [bias.astype(jnp.float32),
             jnp.full((A_pad - A,), -jnp.inf, dtype=jnp.float32)])
    else:
        weight_p = weight
        bias_p = bias.astype(jnp.float32)
    bias2d = bias_p.reshape(1, A_pad)

    # --- Batch tiling: >=2 grid steps when B is large, sublane aligned ---
    TB = min(block_b, _round_up(pl.cdiv(B, 2), _SUBLANE))
    TB = max(_SUBLANE, _round_up(TB, _SUBLANE))
    grid = (pl.cdiv(B, TB),)   # ragged last block handled by Pallas masking

    return pl.pallas_call(
        functools.partial(_ph_kernel, num_actions=A),
        out_shape=jax.ShapeDtypeStruct((B, A), hiddens.dtype),
        grid_spec=pl.GridSpec(
            grid=grid,
            in_specs=[
                # x tile marches down the batch; W and bias stay resident.
                pl.BlockSpec((TB, H), lambda i: (i, 0)),
                pl.BlockSpec((H, A_pad), lambda i: (0, 0)),
                pl.BlockSpec((1, A_pad), lambda i: (0, 0)),
            ],
            # Un-padded output block: last dim == full array dim (A).
            out_specs=pl.BlockSpec((TB, A), lambda i: (i, 0)),
        ),
        # Batch steps are independent -> parallel (megacore split on v7x).
        compiler_params=pltpu.CompilerParams(
            dimension_semantics=("parallel",)
        ),
    )(hiddens, weight_p, bias2d)


if __name__ == "__main__":
    key = jax.random.PRNGKey(0)
    k_x, k_w, k_b, k_x2, k_x3 = jax.random.split(key, 5)

    hidden_size = 32    # config['energy_hidden_size']
    action_size = 16

    # PyTorch Linear init range; weight stored transposed as (H, A).
    bound = 1.0 / float(hidden_size) ** 0.5
    weight = jax.random.uniform(
        k_w, (hidden_size, action_size), minval=-bound, maxval=bound,
        dtype=jnp.float32)
    bias = jax.random.uniform(
        k_b, (action_size,), minval=-bound, maxval=bound, dtype=jnp.float32)

    # (a) Native module size, forced through the Pallas kernel.
    batch = 8
    h1 = jax.random.normal(k_x, (batch, hidden_size), dtype=jnp.float32)
    o1 = jax.block_until_ready(
        ph_forward(h1, weight, bias, block_b=8, min_pallas_batch=0))
    r1 = ph_reference(h1, weight, bias)
    assert o1.shape == (batch, action_size)
    assert jnp.allclose(o1, r1, atol=1e-5, rtol=1e-5)

    # (b) Ragged batch (20 rows, TB=8 -> 3 grid steps, masked last block,
    #     no wrapper-side padding or slicing).
    batch2 = 20
    h2 = jax.random.normal(k_x2, (batch2, hidden_size), dtype=jnp.float32)
    o2 = jax.block_until_ready(
        ph_forward(h2, weight, bias, block_b=8, min_pallas_batch=0))
    r2 = ph_reference(h2, weight, bias)
    assert o2.shape == (batch2, action_size)
    assert jnp.allclose(o2, r2, atol=1e-5, rtol=1e-5)

    # (c) Production-path config: large batch, default tile -> 2-step
    #     "parallel" grid, resident weights, un-padded (TB, A) output.
    batch3 = 4096
    h3 = jax.random.normal(k_x3, (batch3, hidden_size), dtype=jnp.float32)
    o3 = jax.block_until_ready(ph_forward(h3, weight, bias))
    r3 = ph_reference(h3, weight, bias)
    assert o3.shape == (batch3, action_size)
    assert jnp.allclose(o3, r3, atol=1e-5, rtol=1e-5)

    # (d) Small-batch dispatch path (falls back to fused XLA).
    o4 = jax.block_until_ready(ph_forward(h1, weight, bias))
    assert jnp.allclose(o4, r1, atol=1e-5, rtol=1e-5)

    print("KERNEL_OK")
</pallas_src>

<mosaic_0001>
module attributes {stable_mosaic.version = 11 : i64} {
  func.func @_ph_kernel(%arg0: i32, %arg1: memref<8x32xf32, #tpu.memory_space<vmem>>, %arg2: memref<32x128xf32, #tpu.memory_space<vmem>>, %arg3: memref<1x128xf32, #tpu.memory_space<vmem>>, %arg4: memref<8x16xf32, #tpu.memory_space<vmem>>) attributes {dimension_semantics = [#tpu.dimension_semantics<parallel>], iteration_bounds = array<i64: 1>, scalar_prefetch = 0 : i64, scratch_operands = 0 : i64, tpu.core_type = #tpu.core_type<tc>, window_params = [{transform_indices = @transform_0, window_bounds = array<i64: 8, 32>}, {pipeline_mode = #tpu.pipeline_mode<synchronous>, transform_indices = @transform_1, window_bounds = array<i64: 32, 128>}, {pipeline_mode = #tpu.pipeline_mode<synchronous>, transform_indices = @transform_2, window_bounds = array<i64: 1, 128>}, {transform_indices = @transform_3, window_bounds = array<i64: 8, 16>}]} {
    %c0 = arith.constant 0 : index
    %c0_0 = arith.constant 0 : index
    %0 = vector.load %arg1[%c0, %c0_0] : memref<8x32xf32, #tpu.memory_space<vmem>>, vector<8x32xf32>
    %c0_1 = arith.constant 0 : index
    %c0_2 = arith.constant 0 : index
    %1 = vector.load %arg2[%c0_1, %c0_2] : memref<32x128xf32, #tpu.memory_space<vmem>>, vector<32x128xf32>
    %cst = arith.constant dense<0.000000e+00> : vector<8x128xf32>
    %2 = tpu.matmul %0, %1, %cst {dimension_numbers = #tpu.dot_dimension_numbers<[1], [0], [0], [1], [0, 0, 1, 1], [], []>} : vector<8x32xf32>, vector<32x128xf32>, vector<8x128xf32> -> vector<8x128xf32>
    %c0_3 = arith.constant 0 : index
    %c0_4 = arith.constant 0 : index
    %3 = vector.load %arg3[%c0_3, %c0_4] : memref<1x128xf32, #tpu.memory_space<vmem>>, vector<1x128xf32>
    %4 = vector.broadcast %3 : vector<1x128xf32> to vector<8x128xf32>
    %5 = arith.addf %2, %4 : vector<8x128xf32>
    %cst_5 = arith.constant dense<0xFF800000> : vector<8xf32>
    %6 = vector.multi_reduction <maximumf>, %5, %cst_5 [1] : vector<8x128xf32> to vector<8xf32>
    %7 = vector.shape_cast %6 : vector<8xf32> to vector<8x1xf32>
    %8 = vector.broadcast %7 : vector<8x1xf32> to vector<8x128xf32>
    %9 = arith.subf %5, %8 : vector<8x128xf32>
    %10 = math.exp %9 : vector<8x128xf32>
    %cst_6 = arith.constant dense<0.000000e+00> : vector<8xf32>
    %11 = vector.multi_reduction <add>, %10, %cst_6 [1] : vector<8x128xf32> to vector<8xf32>
    %12 = vector.shape_cast %11 : vector<8xf32> to vector<8x1xf32>
    %13 = math.log %12 : vector<8x1xf32>
    %14 = vector.broadcast %13 : vector<8x1xf32> to vector<8x128xf32>
    %15 = arith.subf %9, %14 : vector<8x128xf32>
    %16 = vector.extract_strided_slice %15 {offsets = [0, 0], sizes = [8, 16], strides = [1, 1]} : vector<8x128xf32> to vector<8x16xf32>
    %c0_7 = arith.constant 0 : index
    %c0_8 = arith.constant 0 : index
    %17 = vector.load %arg4[%c0_7, %c0_8] : memref<8x16xf32, #tpu.memory_space<vmem>>, vector<8x16xf32>
    tpu.vector_store %arg4[%c0_7, %c0_8], %16 {strides = array<i32>} : memref<8x16xf32, #tpu.memory_space<vmem>>, vector<8x16xf32>,
    return
  }
  func.func @transform_0(%arg0: i32) -> (i32, i32) {
    %c0_i32 = arith.constant 0 : i32
    %c0_i32_0 = arith.constant 0 : i32
    return %arg0, %c0_i32 : i32, i32
  }
  func.func @transform_1(%arg0: i32) -> (i32, i32) {
    %c0_i32 = arith.constant 0 : i32
    %c0_i32_0 = arith.constant 0 : i32
    %c0_i32_1 = arith.constant 0 : i32
    return %c0_i32, %c0_i32_0 : i32, i32
  }
  func.func @transform_2(%arg0: i32) -> (i32, i32) {
    %c0_i32 = arith.constant 0 : i32
    %c0_i32_0 = arith.constant 0 : i32
    %c0_i32_1 = arith.constant 0 : i32
    return %c0_i32, %c0_i32_0 : i32, i32
  }
  func.func @transform_3(%arg0: i32) -> (i32, i32) {
    %c0_i32 = arith.constant 0 : i32
    %c0_i32_0 = arith.constant 0 : i32
    return %arg0, %c0_i32 : i32, i32
  }
}

</mosaic_0001>

<llo_original>
// kernel: ph_forward.1
$region0: #{ph_forward.1}
  #allocation0 [shape = 'u32[]', space=smem, size = 0x4, offset = 0x4, fixed_abs, tag = 'smem constant byte address 0x4 - core index']
  #allocation1 [shape = 'u32[72,128]{1,0:T(1,128)}', space=vmem, size = 0x9000, scoped, tag = 'internal scratch']
  %s0 = inlined_call_operand.vmem [shape: f32[8,32], index: 0, kind: input, shape index: {}]
  %s1 = inlined_call_operand.vmem [shape: f32[32,128], index: 1, kind: input, shape index: {}]
  %s2 = inlined_call_operand.vmem [shape: f32[1,128], index: 2, kind: input, shape index: {}]
  %s3 = inlined_call_operand.hbm [shape: f32[8,16], index: 3, kind: output, shape index: {}]
  %s4 = sld [smem:[#allocation0]]
  $region22: #{ph_forward.1} parent=0
    _
  %s6 = ssub.s32 1, %s4
  %s7 = scalar_select 0, %s6, %s4
  $region1: #{ph_forward.1} parent=0
    #allocation2 [shape = 'u8[4096]{0}', space=vmem, size = 0x1000, scoped, tag = 'output window, operand 0, single buffered']
    #allocation3 [shape = 's32[1]{0}', space=sflag, size = 0x4, scoped, tag = 'scoped memory for ph_forward.1']
    %8 = vsyncpa [#allocation3], 0
    // Predicated region
    $region2: #{ph_forward.1} parent=1 // pred_check
      _
    $region3: #{ph_forward.1} parent=1 // pred_check_branch
      %10 = sbr.rel (0) target = $region5
    $region4: #{ph_forward.1} parent=1 // pred_region
      _
    $region5: #{ph_forward.1} parent=1 // pred_fallthru
      _
    // Predicated region
    $region6: #{ph_forward.1} parent=1 // pred_check
      _
    $region7: #{ph_forward.1} parent=1 // pred_check_branch
      %12 = sbr.rel (0) target = $region9
    $region8: #{ph_forward.1} parent=1 // pred_region
      _
    $region9: #{ph_forward.1} parent=1 // pred_fallthru
      _
    // Predicated region
    $region10: #{ph_forward.1} parent=1 // pred_check
      _
    $region11: #{ph_forward.1} parent=1 // pred_check_branch
      %14 = sbr.rel (0) target = $region13
    $region12: #{ph_forward.1} parent=1 // pred_region
      _
    $region13: #{ph_forward.1} parent=1 // pred_fallthru
      _
    %v15 = vld [vmem:[%s0] sm:$0xff]
    %v16 = vld [vmem:[%s1] sm:$0xff]
    %v17 = vld [vmem:[%s1 + $0x8] sm:$0xff]
    %v18 = vld [vmem:[%s1 + $0x10] sm:$0xff]
    %v19 = vld [vmem:[%s1 + $0x18] sm:$0xff]
    %v20 = vld [vmem:[%s2] sm:$0x1]
    %v22 = vperm.slane %v20, 0
    %vm24 = vcmask 261120
    %v26 = vsel %vm24, %v15, 0
    %28 = vmatpush.msra.mxu0 0.0
    %29 = vmatpush.msra.mxu0 0.0
    %30 = vmatpush.msra.mxu0 0.0
    %31 = vmatpush.msra.mxu0 0.0
    %32 = vmatpush.msra.mxu0 0.0
    %33 = vmatpush.msra.mxu0 0.0
    %34 = vmatpush.msra.mxu0 0.0
    %35 = vmatpush.msra.mxu0 0.0
    %36 = vmatpush.msra.mxu0 0.0
    %37 = vmatpush.msra.mxu0 0.0
    %38 = vmatpush.msra.mxu0 0.0
    %39 = vmatpush.msra.mxu0 0.0
    %40 = vmatpush.msra.mxu0 %v19
    %41 = vmatpush.msra.mxu0 %v18
    %42 = vmatpush.msra.mxu0 %v17
    %43 = vmatpush.msra.mxu0 %v16
    %44 = vmatmul.f32.gmra.mxu0 %v26
    %v45 = vpop.f32.mrf.mxu0
    %v46 = vadd.f32 %v22, %v45
    %47 = vdwg.mxu0
    %48 = vmax.xlane.f32.xlu0 %v46
    %v49 = vpop.xlane.xlu0 %48
    %v50 = vsub.f32 %v46, %v49
    %v51 = vmul.f32 %v50, 1.442695
    %v52 = vpow.pop %v51
    %53 = vadd.xlane.f32.xlu0 %v52
    %v54 = vpop.xlane.xlu0 %53
    %v55 = vlog2.pop %v54
    %v56 = vmul.f32 %v55, 0.6931472
    %v57 = vsub.f32 %v50, %v56
    %vm58 = vcmask 130048
    %59 = vst.msk [vmem:[#allocation2] sm:$0xff] %vm58, %v57
    // Predicated region
    $region14: #{ph_forward.1} parent=1 // pred_check
      _
    $region15: #{ph_forward.1} parent=1 // pred_check_branch
      %61 = sbr.rel (0) target = $region17
    $region16: #{ph_forward.1} parent=1 // pred_region
      %63 = vsyncadd [#allocation3], 0
      %s65 = sshll.u32 [#allocation2], 4
      %s66 = int_to_ptr.vmem [resolvable:$true] %s65
      %s67 = sshll.u32 %s3, 4
      %s68 = int_to_ptr.hbm [resolvable:$true] %s67
      %70 = dma.vmem_to_hbm [thread:$0]  %s66, 128, %s68, [#allocation3]
    $region17: #{ph_forward.1} parent=1 // pred_fallthru
      _
    // Predicated region
    $region18: #{ph_forward.1} parent=1 // pred_check
      _
    $region19: #{ph_forward.1} parent=1 // pred_check_branch
      %72 = sbr.rel (0) target = $region21
    $region20: #{ph_forward.1} parent=1 // pred_region
      %74 = dma.done [#allocation3], 128
    $region21: #{ph_forward.1} parent=1 // pred_fallthru
      _
    %75 = vsyncpa [#allocation3], 1

</llo_original>
